<compile_context>
chip_gen: v5e
topology: v5e:2x2
jax: 0.10.0
libtpu: 0.0.40
codegen_flags: <defaults>
</compile_context>

<pallas_src>
import functools

import jax
import jax.numpy as jnp
from jax import lax
from jax.experimental import pallas as pl
from jax.experimental.pallas import tpu as pltpu

_EPS = 1e-07

# Native sublane tile per itemsize (f32 -> 8, bf16 -> 16, int8/fp8 -> 32).
_SUBLANE = {4: 8, 2: 16, 1: 32}


def _kld_kernel(outputs_ref, targets_ref, partial_ref, *,
                total_rows, tile_rows, needs_mask):
    # Upcast (no-op for f32; enables bf16 inputs with f32 math).
    x = outputs_ref[...].astype(jnp.float32)   # (TN, C) logits
    t = targets_ref[...].astype(jnp.float32)   # (TN, C) target probs

    # log_softmax over the class axis (dim=1), max-stabilized.
    m = jnp.max(x, axis=1, keepdims=True)
    z = x - m
    lse = jnp.log(jnp.sum(jnp.exp(z), axis=1, keepdims=True))
    log_prob = z - lse

    # clamp targets to [1e-7, 1 - 1e-7], KLDiv pointwise term.
    tc = jnp.clip(t, _EPS, 1.0 - _EPS)
    pointwise = tc * (jnp.log(tc) - log_prob)  # (TN, C)

    if needs_mask:
        # Ragged last tile: discard padded rows with a (TN, 1) iota compare that
        # broadcasts inside the select.  Keep this a select (NOT a multiply):
        # padded rows hold unspecified data and exp/log on them may be NaN/Inf.
        i = pl.program_id(0)
        row_ids = i * tile_rows + lax.broadcasted_iota(jnp.int32, (tile_rows, 1), 0)
        pointwise = jnp.where(row_ids < total_rows, pointwise, 0.0)

    # Vreg-shaped partial: splitting the leading dim on its native 8-row tile is a
    # free reshape, and the axis-0 sum lowers to pure elementwise vreg adds
    # (no cross-lane XLU reduce, no scalar broadcast).
    c = pointwise.shape[1]
    partial = jnp.sum(pointwise.reshape(tile_rows // 8, 8, c), axis=0)   # (8, C)
    partial_ref[...] = partial[None, :, :]


def _vmem_budget():
    """Generation-aware (per-input tile bytes, vmem_limit_bytes)."""
    try:
        cap = int(pltpu.get_tpu_info().vmem_capacity_bytes)
    except Exception:  # conservative fallback (v7x per-TC VMEM)
        cap = 64 << 20
    # ~6.4 MiB/input on v7x (64 MiB VMEM), 8 MiB/input on v5e/v6e (128 MiB VMEM).
    per_input_tile = min(8 << 20, cap // 10)
    # Live VMEM ~= 2 inputs x 2 pipeline buffers x tile (+ tiny output blocks).
    live = 4 * per_input_tile
    vmem_limit = min(cap - (8 << 20), live + (8 << 20))
    return per_input_tile, vmem_limit


def _choose_tile_rows(n_rows, n_cols, itemsize, per_input_tile_bytes):
    sub = _SUBLANE.get(itemsize, 8)
    rows = per_input_tile_bytes // max(1, n_cols * itemsize)
    rows = max(sub, (rows // sub) * sub)           # dtype-correct sublane rounding
    rows_cap = (-(-n_rows // sub)) * sub           # round_up(N, sublane)
    return int(min(rows, rows_cap))


def kld_loss(outputs, targets, tile_rows=None):
    """Pallas TPU implementation of KLD.forward(outputs, targets) (batchmean)."""
    assert outputs.shape == targets.shape
    assert outputs.ndim == 2, "kernel expects (N, C) inputs"
    N, C = outputs.shape
    itemsize = jnp.dtype(outputs.dtype).itemsize

    per_input_tile, vmem_limit = _vmem_budget()
    if tile_rows is None:
        tile_rows = _choose_tile_rows(N, C, itemsize, per_input_tile)
    assert tile_rows % 8 == 0, "tile_rows must be a multiple of 8"

    num_tiles = pl.cdiv(N, tile_rows)
    needs_mask = (N % tile_rows) != 0   # trace-time elision of the ragged-row mask

    kernel = functools.partial(_kld_kernel, total_rows=N, tile_rows=tile_rows,
                               needs_mask=needs_mask)

    partials = pl.pallas_call(
        kernel,
        out_shape=jax.ShapeDtypeStruct((num_tiles, 8, C), jnp.float32),
        grid=(num_tiles,),
        in_specs=[
            pl.BlockSpec((tile_rows, C), lambda i: (i, 0)),
            pl.BlockSpec((tile_rows, C), lambda i: (i, 0)),
        ],
        out_specs=pl.BlockSpec((1, 8, C), lambda i: (i, 0, 0)),
        compiler_params=pltpu.CompilerParams(
            dimension_semantics=("parallel",),
            vmem_limit_bytes=int(vmem_limit),
        ),
    )(outputs, targets)

    # Final reduction + batchmean divide (done exactly once, with the true N).
    return jnp.sum(partials) / jnp.float32(N)


def _kld_ref(outputs, targets):
    # Pure-JAX reference for correctness checking.
    logp = jax.nn.log_softmax(outputs.astype(jnp.float32), axis=1)
    tc = jnp.clip(targets.astype(jnp.float32), _EPS, 1.0 - _EPS)
    return jnp.sum(tc * (jnp.log(tc) - logp)) / outputs.shape[0]


if __name__ == "__main__":
    key = jax.random.PRNGKey(0)
    k1, k2, k3, k4, k5, k6 = jax.random.split(key, 6)

    # 1) Primary small, lane-aligned f32 case (single tile).
    N, C = 8, 128
    outputs = jax.random.normal(k1, (N, C), dtype=jnp.float32)          # logits
    targets = jax.nn.softmax(jax.random.normal(k2, (N, C)), axis=1)     # prob targets
    loss = kld_loss(outputs, targets)
    jax.block_until_ready(loss)
    ref = _kld_ref(outputs, targets)
    assert jnp.allclose(loss, ref, rtol=1e-5, atol=1e-6), (loss, ref)

    # 2) Ragged-batch f32 case: multi-tile grid + last-tile row masking path.
    N2, C2 = 13, 256
    outputs2 = jax.random.normal(k3, (N2, C2), dtype=jnp.float32)
    targets2 = jax.nn.softmax(jax.random.normal(k4, (N2, C2)), axis=1)
    loss2 = kld_loss(outputs2, targets2, tile_rows=8)
    jax.block_until_ready(loss2)
    ref2 = _kld_ref(outputs2, targets2)
    assert jnp.allclose(loss2, ref2, rtol=1e-5, atol=1e-6), (loss2, ref2)

    # 3) bf16 inputs (halves HBM traffic; f32 math in-kernel), 16-row sublane tile.
    N3, C3 = 16, 128
    outputs3 = jax.random.normal(k5, (N3, C3), dtype=jnp.float32).astype(jnp.bfloat16)
    targets3 = jax.nn.softmax(jax.random.normal(k6, (N3, C3)), axis=1).astype(jnp.bfloat16)
    loss3 = kld_loss(outputs3, targets3)
    jax.block_until_ready(loss3)
    ref3 = _kld_ref(outputs3, targets3)
    assert jnp.allclose(loss3, ref3, rtol=1e-3, atol=1e-5), (loss3, ref3)

    print("KERNEL_OK")
</pallas_src>

<mosaic_0001>
module attributes {stable_mosaic.version = 11 : i64} {
  func.func @_kld_kernel(%arg0: i32, %arg1: memref<8x128xf32, #tpu.memory_space<vmem>>, %arg2: memref<8x128xf32, #tpu.memory_space<vmem>>, %arg3: memref<1x8x128xf32, #tpu.memory_space<vmem>>) attributes {dimension_semantics = [#tpu.dimension_semantics<parallel>], iteration_bounds = array<i64: 1>, scalar_prefetch = 0 : i64, scratch_operands = 0 : i64, tpu.core_type = #tpu.core_type<tc>, window_params = [{transform_indices = @transform_0, window_bounds = array<i64: 8, 128>}, {transform_indices = @transform_1, window_bounds = array<i64: 8, 128>}, {transform_indices = @transform_2, window_bounds = array<i64: 1, 8, 128>}]} {
    %c0 = arith.constant 0 : index
    %c0_0 = arith.constant 0 : index
    %0 = vector.load %arg1[%c0, %c0_0] : memref<8x128xf32, #tpu.memory_space<vmem>>, vector<8x128xf32>
    %c0_1 = arith.constant 0 : index
    %c0_2 = arith.constant 0 : index
    %1 = vector.load %arg2[%c0_1, %c0_2] : memref<8x128xf32, #tpu.memory_space<vmem>>, vector<8x128xf32>
    %cst = arith.constant dense<0xFF800000> : vector<8xf32>
    %2 = vector.multi_reduction <maximumf>, %0, %cst [1] : vector<8x128xf32> to vector<8xf32>
    %3 = vector.shape_cast %2 : vector<8xf32> to vector<8x1xf32>
    %4 = vector.broadcast %3 : vector<8x1xf32> to vector<8x128xf32>
    %5 = arith.subf %0, %4 : vector<8x128xf32>
    %6 = math.exp %5 : vector<8x128xf32>
    %cst_3 = arith.constant dense<0.000000e+00> : vector<8xf32>
    %7 = vector.multi_reduction <add>, %6, %cst_3 [1] : vector<8x128xf32> to vector<8xf32>
    %8 = vector.shape_cast %7 : vector<8xf32> to vector<8x1xf32>
    %9 = math.log %8 : vector<8x1xf32>
    %10 = vector.broadcast %9 : vector<8x1xf32> to vector<8x128xf32>
    %11 = arith.subf %5, %10 : vector<8x128xf32>
    %cst_4 = arith.constant 1.000000e-07 : f32
    %cst_5 = arith.constant 0.99999988 : f32
    %12 = vector.broadcast %cst_4 : f32 to vector<8x128xf32>
    %13 = arith.maximumf %12, %1 : vector<8x128xf32>
    %14 = vector.broadcast %cst_5 : f32 to vector<8x128xf32>
    %15 = arith.minimumf %14, %13 : vector<8x128xf32>
    %16 = math.log %15 : vector<8x128xf32>
    %17 = arith.subf %16, %11 : vector<8x128xf32>
    %18 = arith.mulf %15, %17 : vector<8x128xf32>
    %19 = vector.shape_cast %18 : vector<8x128xf32> to vector<1x8x128xf32>
    %cst_6 = arith.constant dense<0.000000e+00> : vector<8x128xf32>
    %20 = vector.multi_reduction <add>, %19, %cst_6 [0] : vector<1x8x128xf32> to vector<8x128xf32>
    %21 = vector.shape_cast %20 : vector<8x128xf32> to vector<1x8x128xf32>
    %c0_7 = arith.constant 0 : index
    %c0_8 = arith.constant 0 : index
    %c0_9 = arith.constant 0 : index
    %22 = vector.load %arg3[%c0_7, %c0_8, %c0_9] : memref<1x8x128xf32, #tpu.memory_space<vmem>>, vector<1x8x128xf32>
    tpu.vector_store %arg3[%c0_7, %c0_8, %c0_9], %21 {strides = array<i32>} : memref<1x8x128xf32, #tpu.memory_space<vmem>>, vector<1x8x128xf32>,
    return
  }
  func.func @transform_0(%arg0: i32) -> (i32, i32) {
    %c0_i32 = arith.constant 0 : i32
    %c0_i32_0 = arith.constant 0 : i32
    return %arg0, %c0_i32 : i32, i32
  }
  func.func @transform_1(%arg0: i32) -> (i32, i32) {
    %c0_i32 = arith.constant 0 : i32
    %c0_i32_0 = arith.constant 0 : i32
    return %arg0, %c0_i32 : i32, i32
  }
  func.func @transform_2(%arg0: i32) -> (i32, i32, i32) {
    %c0_i32 = arith.constant 0 : i32
    %c0_i32_0 = arith.constant 0 : i32
    %c0_i32_1 = arith.constant 0 : i32
    return %arg0, %c0_i32, %c0_i32_0 : i32, i32, i32
  }
}

</mosaic_0001>

<llo_original>
// kernel: tpu_custom_call.1
$region0: #{tpu_custom_call.1}
  #allocation0 [shape = 'u32[]', space=smem, size = 0x4, offset = 0x4, fixed_abs, tag = 'smem constant byte address 0x4 - core index']
  #allocation1 [shape = 'u32[72,128]{1,0:T(1,128)}', space=vmem, size = 0x9000, scoped, tag = 'internal scratch']
  %s0 = inlined_call_operand.hbm [shape: f32[8,128], index: 0, kind: input, shape index: {}]
  %s1 = inlined_call_operand.hbm [shape: f32[8,128], index: 1, kind: input, shape index: {}]
  %s2 = inlined_call_operand.hbm [shape: f32[1,8,128], index: 2, kind: output, shape index: {}]
  %s3 = sld [smem:[#allocation0]]
  $region26: #{tpu_custom_call.1} parent=0
    _
  %s5 = ssub.s32 1, %s3
  %s6 = scalar_select 0, %s5, %s3
  $region1: #{tpu_custom_call.1} parent=0
    #allocation2 [shape = 'u8[4096]{0}', space=vmem, size = 0x1000, scoped, tag = 'input window, operand 0, single buffered']
    #allocation3 [shape = 's32[1]{0}', space=sflag, size = 0x4, scoped, tag = 'scoped memory for tpu_custom_call.1']
    #allocation4 [shape = 's32[1]{0}', space=sflag, size = 0x4, scoped, tag = 'scoped memory for tpu_custom_call.1']
    #allocation5 [shape = 'u8[4096]{0}', space=vmem, size = 0x1000, scoped, tag = 'input window, operand 1, single buffered']
    #allocation6 [shape = 's32[1]{0}', space=sflag, size = 0x4, scoped, tag = 'scoped memory for tpu_custom_call.1']
    #allocation7 [shape = 'u8[4096]{0}', space=vmem, size = 0x1000, scoped, tag = 'output window, operand 0, single buffered']
    %7 = vsyncpa [#allocation3], 0
    %8 = vsyncpa [#allocation6], 0
    %9 = vsyncpa [#allocation4], 0
    // Predicated region
    $region2: #{tpu_custom_call.1} parent=1 // pred_check
      _
    $region3: #{tpu_custom_call.1} parent=1 // pred_check_branch
      %11 = sbr.rel (0) target = $region5
    $region4: #{tpu_custom_call.1} parent=1 // pred_region
      %13 = vsyncadd [#allocation3], 0
      %s15 = sshll.u32 %s0, 4
      %s16 = int_to_ptr.hbm [resolvable:$true] %s15
      %s17 = sshll.u32 [#allocation2], 4
      %s18 = int_to_ptr.vmem [resolvable:$true] %s17
      %20 = dma.hbm_to_vmem [thread:$0]  %s16, 128, %s18, [#allocation3]
    $region5: #{tpu_custom_call.1} parent=1 // pred_fallthru
      _
    // Predicated region
    $region6: #{tpu_custom_call.1} parent=1 // pred_check
      _
    $region7: #{tpu_custom_call.1} parent=1 // pred_check_branch
      %22 = sbr.rel (0) target = $region9
    $region8: #{tpu_custom_call.1} parent=1 // pred_region
      %24 = vsyncadd [#allocation6], 0
      %s26 = sshll.u32 %s1, 4
      %s27 = int_to_ptr.hbm [resolvable:$true] %s26
      %s28 = sshll.u32 [#allocation5], 4
      %s29 = int_to_ptr.vmem [resolvable:$true] %s28
      %31 = dma.hbm_to_vmem [thread:$0]  %s27, 128, %s29, [#allocation6]
    $region9: #{tpu_custom_call.1} parent=1 // pred_fallthru
      _
    // Predicated region
    $region10: #{tpu_custom_call.1} parent=1 // pred_check
      _
    $region11: #{tpu_custom_call.1} parent=1 // pred_check_branch
      %33 = sbr.rel (0) target = $region13
    $region12: #{tpu_custom_call.1} parent=1 // pred_region
      %35 = dma.done [#allocation3], 128
    $region13: #{tpu_custom_call.1} parent=1 // pred_fallthru
      _
    // Predicated region
    $region14: #{tpu_custom_call.1} parent=1 // pred_check
      _
    $region15: #{tpu_custom_call.1} parent=1 // pred_check_branch
      %37 = sbr.rel (0) target = $region17
    $region16: #{tpu_custom_call.1} parent=1 // pred_region
      %39 = dma.done [#allocation6], 128
    $region17: #{tpu_custom_call.1} parent=1 // pred_fallthru
      _
    %v40 = vld [vmem:[#allocation2] sm:$0xff]
    %v41 = vld [vmem:[#allocation5] sm:$0xff]
    %42 = vmax.xlane.f32.xlu0 %v40
    %v43 = vpop.xlane.xlu0 %42
    %v44 = vsub.f32 %v40, %v43
    %v45 = vmul.f32 %v44, 1.442695
    %v46 = vpow.pop %v45
    %47 = vadd.xlane.f32.xlu0 %v46
    %v48 = vpop.xlane.xlu0 %47
    %v49 = vlog2.pop %v48
    %v50 = vmul.f32 %v49, 0.6931472
    %v51 = vsub.f32 %v44, %v50
    %v52 = vmax.f32 %v41, 1e-07
    %v53 = vmin.f32 %v52, 0.9999999
    %v54 = vlog2.pop %v53
    %v55 = vmul.f32 %v54, 0.6931472
    %v56 = vsub.f32 %v55, %v51
    %v57 = vmul.f32 %v53, %v56
    %v58 = vadd.f32 %v57, 0.0
    %59 = vst [vmem:[#allocation7] sm:$0xff] %v58
    // Predicated region
    $region18: #{tpu_custom_call.1} parent=1 // pred_check
      _
    $region19: #{tpu_custom_call.1} parent=1 // pred_check_branch
      %61 = sbr.rel (0) target = $region21
    $region20: #{tpu_custom_call.1} parent=1 // pred_region
      %63 = vsyncadd [#allocation4], 0
      %s65 = sshll.u32 [#allocation7], 4
      %s66 = int_to_ptr.vmem [resolvable:$true] %s65
      %s67 = sshll.u32 %s2, 4
      %s68 = int_to_ptr.hbm [resolvable:$true] %s67
      %70 = dma.vmem_to_hbm [thread:$0]  %s66, 128, %s68, [#allocation4]
    $region21: #{tpu_custom_call.1} parent=1 // pred_fallthru
      _
    // Predicated region
    $region22: #{tpu_custom_call.1} parent=1 // pred_check
      _
    $region23: #{tpu_custom_call.1} parent=1 // pred_check_branch
      %72 = sbr.rel (0) target = $region25
    $region24: #{tpu_custom_call.1} parent=1 // pred_region
      %74 = dma.done [#allocation4], 128
    $region25: #{tpu_custom_call.1} parent=1 // pred_fallthru
      _
    %75 = vsyncpa [#allocation3], 1
    %76 = vsyncpa [#allocation6], 1
    %77 = vsyncpa [#allocation4], 1

</llo_original>
